<compile_context>
chip_gen: v5e
topology: v5e:2x2
jax: 0.10.0
libtpu: 0.0.40
codegen_flags: <defaults>
</compile_context>

<pallas_src>
import functools
import math

import jax
import jax.numpy as jnp
from jax.experimental import pallas as pl
from jax.experimental.pallas import tpu as pltpu


def _round_up(x, m):
    return ((x + m - 1) // m) * m


# -----------------------------------------------------------------------------
# Kernel: one batch tile of the full 3-layer MLP.
#   obs_ref : (Bt, D_obs)  f32/bf16   act_ref : (Bt, D_act) f32
#   w1o_ref : (D_obs, Hp)  bf16       w1a_ref : (D_act, Hp) f32
#   b1/b2   : (1, Hp)      f32        w2_ref  : (Hp, Hp)    bf16
#   w3_ref  : (1, Hp)      f32        b3_ref  : (1, 1)      f32 in SMEM
#   out_ref : (1, 1, Bt)   f32        (lane-dense value row)
# Straight-line body (no inner loop), so bias broadcasts happen exactly once.
# -----------------------------------------------------------------------------
def _critic_kernel(obs_ref, act_ref, w1o_ref, w1a_ref, b1_ref,
                   w2_ref, b2_ref, w3_ref, b3_ref, out_ref):
    mm_dtype = w1o_ref.dtype  # bf16 matmul operands, f32 accumulation

    # layer 1: obs part on the MXU
    pre1 = jnp.dot(obs_ref[...].astype(mm_dtype), w1o_ref[...],
                   preferred_element_type=jnp.float32)
    act = act_ref[...]
    if act_ref.shape[1] == 1:
        # discrete action: rank-1 outer-product add on the VPU (no K=1 matmul)
        pre1 = pre1 + act * w1a_ref[...]
    else:
        pre1 = pre1 + jnp.dot(act, w1a_ref[...],
                              preferred_element_type=jnp.float32)
    # bias add + tanh in bf16: h1 feeds a bf16 matmul anyway; bf16 tanh doubles
    # EUP throughput on v6e/v7x (on v5e it is upconverted, no harm).
    h1 = jnp.tanh((pre1 + b1_ref[...]).astype(mm_dtype))

    # layer 2 (tanh kept in f32 for the value head)
    h2 = jnp.tanh(jnp.dot(h1, w2_ref[...],
                          preferred_element_type=jnp.float32) + b2_ref[...])

    # value head (out_features == 1): (1,Hp) x (Hp,Bt) matmul -> lane-dense row.
    # The (Bt,Hp) transpose uses the otherwise-idle XLU; storing a dense row
    # avoids masked 1-lane `vst.msk` stores of a (Bt,1) column.
    vt = jnp.dot(w3_ref[...], h2.T, preferred_element_type=jnp.float32)
    vt = vt + b3_ref[0, 0]
    out_ref[...] = vt.reshape(out_ref.shape).astype(out_ref.dtype)


def critic_forward_pallas(observation, action_2d, params, *, batch_tile=1024):
    """observation: (B, D_obs) f32/bf16, action_2d: (B, D_act) f32 -> (B,) f32."""
    w1_obs, w1_act, b1, w2, b2, w3, b3 = params
    B, d_obs = observation.shape
    d_act = action_2d.shape[1]

    # Batch tile: capped at ceil(B/2) (rounded to 16 = bf16 sublane pack) so the
    # grid has >= 2 steps whenever possible (both TensorCores fed on v7x); at
    # large B, bt == batch_tile, amortizing the ~0.35 us per-grid-step overhead.
    # Sweep batch_tile in [1024, 4096] on the target generation.
    bt = min(batch_tile, max(16, _round_up(-(-B // 2), 16)))
    num_tiles = pl.cdiv(B, bt)
    grid = (num_tiles,)

    def batch_spec(feat):
        return pl.BlockSpec((bt, feat), lambda i: (i, 0))

    def resident_spec(arr):
        # Constant block index -> weights/biases stay resident in VMEM.
        return pl.BlockSpec(arr.shape, lambda i: (0, 0))

    out = pl.pallas_call(
        _critic_kernel,
        out_shape=jax.ShapeDtypeStruct((num_tiles, 1, bt), jnp.float32),
        grid=grid,
        in_specs=[
            batch_spec(d_obs),                       # observation tile
            batch_spec(d_act),                       # action tile
            resident_spec(w1_obs), resident_spec(w1_act), resident_spec(b1),
            resident_spec(w2), resident_spec(b2),
            resident_spec(w3),
            pl.BlockSpec(memory_space=pltpu.MemorySpace.SMEM),   # scalar b3
        ],
        out_specs=pl.BlockSpec((1, 1, bt), lambda i: (i, 0, 0)),  # lane-dense
        compiler_params=pltpu.CompilerParams(
            # "parallel" lets Mosaic shard batch tiles across TCs on v7x;
            # TODO(synk): try pltpu.CORE_PARALLEL for an explicit core split.
            dimension_semantics=("parallel",)),
    )(observation, action_2d, w1_obs, w1_act, b1, w2, b2, w3, b3)

    # NOTE: rows past B in the last (remainder) tile hold values computed from
    # padded input rows; rows are independent, so valid rows are exact and the
    # extras are sliced off here.  Do not "fix" this with an in-kernel guard.
    return out.reshape(-1)[:B]


# -----------------------------------------------------------------------------
# Parameter construction (mirrors Critic.__init__):
#   Linear(input_dim + action_dim, hidden) / Linear(hidden, hidden) /
#   Linear(hidden, value_dim), orthogonal weights with gain('relu')=sqrt(2),
#   zero biases.  Stored kernel-ready:
#     * (in, out) layout, layer-1 split into obs / act parts (fused concat),
#     * hidden padded to a multiple of 128 with zero rows/cols (same function),
#     * only column 0 of the value head is kept (forward returns `[:, 0]`),
#     * matmul weights in bf16, everything else f32.
# -----------------------------------------------------------------------------
def make_critic_params(key, input_dim, action_dim, hidden_dim=128, value_dim=1,
                       continous_action=False, matmul_dtype=jnp.bfloat16):
    if not continous_action:
        action_dim = 1
    hp = _round_up(hidden_dim, 128)
    pad_h = hp - hidden_dim
    gain = math.sqrt(2.0)  # nn.init.calculate_gain('relu')
    ortho = jax.nn.initializers.orthogonal(scale=gain, column_axis=-1)

    k1, k2, k3 = jax.random.split(key, 3)

    w1 = ortho(k1, (input_dim + action_dim, hidden_dim), jnp.float32)
    w1 = jnp.pad(w1, ((0, 0), (0, pad_h)))
    w1_obs = w1[:input_dim].astype(matmul_dtype)          # (D_obs, Hp)
    w1_act = w1[input_dim:].astype(jnp.float32)           # (D_act, Hp) tiny -> f32
    b1 = jnp.zeros((1, hp), jnp.float32)

    w2 = ortho(k2, (hidden_dim, hidden_dim), jnp.float32)
    w2 = jnp.pad(w2, ((0, pad_h), (0, pad_h))).astype(matmul_dtype)
    b2 = jnp.zeros((1, hp), jnp.float32)

    w3 = ortho(k3, (hidden_dim, value_dim), jnp.float32)
    w3_row = jnp.pad(w3[:, 0], (0, pad_h)).reshape(1, hp).astype(jnp.float32)
    b3 = jnp.zeros((1, 1), jnp.float32)

    return (w1_obs, w1_act, b1, w2, b2, w3_row, b3)


@functools.partial(jax.jit, static_argnames=("continous_action",))
def critic_forward(observation, action, params, continous_action=False):
    # bf16 observations pass straight through (halves the dominant obs HBM
    # stream on v5e); anything else is promoted to f32.
    if observation.dtype in (jnp.float32, jnp.bfloat16):
        obs = observation
    else:
        obs = observation.astype(jnp.float32)
    act = action.astype(jnp.float32)
    if not continous_action:
        act = act[:, None]                           # cheap reshape; no concat
    return critic_forward_pallas(obs, act, params)   # matches `[:, 0]`


def _reference_forward(observation, action, params, continous_action=False):
    """Pure-jnp reference with identical precision choices as the kernel."""
    w1_obs, w1_act, b1, w2, b2, w3, b3 = params
    obs = observation.astype(jnp.float32)
    act = action.astype(jnp.float32) if continous_action \
        else action.astype(jnp.float32)[:, None]
    pre1 = jnp.dot(obs.astype(w1_obs.dtype), w1_obs,
                   preferred_element_type=jnp.float32)
    if act.shape[1] == 1:
        pre1 = pre1 + act * w1_act
    else:
        pre1 = pre1 + jnp.dot(act, w1_act, preferred_element_type=jnp.float32)
    h1 = jnp.tanh((pre1 + b1).astype(w1_obs.dtype))
    h2 = jnp.tanh(jnp.dot(h1, w2, preferred_element_type=jnp.float32) + b2)
    v = jnp.sum(h2.astype(jnp.float32) * w3, axis=-1) + b3[0, 0]
    return v


if __name__ == "__main__":
    # Small shapes consistent with the module: batch=64, input_dim=24,
    # hidden_dim=128 (module default, lane-dense), value_dim=1.
    batch, input_dim, hidden_dim, value_dim = 64, 24, 128, 1

    key = jax.random.PRNGKey(0)
    k_params_d, k_params_c, k_obs, k_act_d, k_act_c = jax.random.split(key, 5)

    observation = jax.random.normal(k_obs, (batch, input_dim), dtype=jnp.float32)

    # --- discrete-action critic (action_dim forced to 1) ----------------------
    params_d = make_critic_params(k_params_d, input_dim, action_dim=4,
                                  hidden_dim=hidden_dim, value_dim=value_dim,
                                  continous_action=False)
    action_d = jax.random.normal(k_act_d, (batch,), dtype=jnp.float32)
    out_d = jax.block_until_ready(
        critic_forward(observation, action_d, params_d, continous_action=False))
    ref_d = _reference_forward(observation, action_d, params_d,
                               continous_action=False)
    assert out_d.shape == (batch,)
    # bf16 activations bound the comparison; kernel and reference share the
    # same rounding points, so the residual difference is a few bf16 ulps.
    assert jnp.allclose(out_d, ref_d, atol=2e-2, rtol=2e-2), \
        float(jnp.max(jnp.abs(out_d - ref_d)))

    # --- continuous-action critic ---------------------------------------------
    action_dim_c = 6
    params_c = make_critic_params(k_params_c, input_dim, action_dim=action_dim_c,
                                  hidden_dim=hidden_dim, value_dim=value_dim,
                                  continous_action=True)
    action_c = jax.random.normal(k_act_c, (batch, action_dim_c), dtype=jnp.float32)
    out_c = jax.block_until_ready(
        critic_forward(observation, action_c, params_c, continous_action=True))
    ref_c = _reference_forward(observation, action_c, params_c,
                               continous_action=True)
    assert out_c.shape == (batch,)
    assert jnp.allclose(out_c, ref_c, atol=2e-2, rtol=2e-2), \
        float(jnp.max(jnp.abs(out_c - ref_c)))

    print("KERNEL_OK")
</pallas_src>

<mosaic_0001>
module attributes {stable_mosaic.version = 11 : i64} {
  func.func @_critic_kernel(%arg0: i32, %arg1: memref<32x24xf32, #tpu.memory_space<vmem>>, %arg2: memref<32x1xf32, #tpu.memory_space<vmem>>, %arg3: memref<24x128xbf16, #tpu.memory_space<vmem>>, %arg4: memref<1x128xf32, #tpu.memory_space<vmem>>, %arg5: memref<1x128xf32, #tpu.memory_space<vmem>>, %arg6: memref<128x128xbf16, #tpu.memory_space<vmem>>, %arg7: memref<1x128xf32, #tpu.memory_space<vmem>>, %arg8: memref<1x128xf32, #tpu.memory_space<vmem>>, %arg9: memref<1x1xf32, #tpu.memory_space<smem>>, %arg10: memref<1x1x32xf32, #tpu.memory_space<vmem>>) attributes {dimension_semantics = [#tpu.dimension_semantics<parallel>], iteration_bounds = array<i64: 2>, scalar_prefetch = 0 : i64, scratch_operands = 0 : i64, tpu.core_type = #tpu.core_type<tc>, window_params = [{transform_indices = @transform_0, window_bounds = array<i64: 32, 24>}, {transform_indices = @transform_1, window_bounds = array<i64: 32, 1>}, {pipeline_mode = #tpu.pipeline_mode<synchronous>, transform_indices = @transform_2, window_bounds = array<i64: 24, 128>}, {pipeline_mode = #tpu.pipeline_mode<synchronous>, transform_indices = @transform_3, window_bounds = array<i64: 1, 128>}, {pipeline_mode = #tpu.pipeline_mode<synchronous>, transform_indices = @transform_4, window_bounds = array<i64: 1, 128>}, {pipeline_mode = #tpu.pipeline_mode<synchronous>, transform_indices = @transform_5, window_bounds = array<i64: 128, 128>}, {pipeline_mode = #tpu.pipeline_mode<synchronous>, transform_indices = @transform_6, window_bounds = array<i64: 1, 128>}, {pipeline_mode = #tpu.pipeline_mode<synchronous>, transform_indices = @transform_7, window_bounds = array<i64: 1, 128>}, {transform_indices = @transform_8, window_bounds = array<i64: 1, 1>}, {transform_indices = @transform_9, window_bounds = array<i64: 1, 1, 32>}]} {
    %c0 = arith.constant 0 : index
    %c0_0 = arith.constant 0 : index
    %0 = vector.load %arg1[%c0, %c0_0] : memref<32x24xf32, #tpu.memory_space<vmem>>, vector<32x24xf32>
    %1 = arith.truncf %0 : vector<32x24xf32> to vector<32x24xbf16>
    %c0_1 = arith.constant 0 : index
    %c0_2 = arith.constant 0 : index
    %2 = vector.load %arg3[%c0_1, %c0_2] : memref<24x128xbf16, #tpu.memory_space<vmem>>, vector<24x128xbf16>
    %cst = arith.constant dense<0.000000e+00> : vector<32x128xf32>
    %3 = tpu.matmul %1, %2, %cst {dimension_numbers = #tpu.dot_dimension_numbers<[1], [0], [0], [1], [0, 0, 1, 1], [], []>} : vector<32x24xbf16>, vector<24x128xbf16>, vector<32x128xf32> -> vector<32x128xf32>
    %c0_3 = arith.constant 0 : index
    %c0_4 = arith.constant 0 : index
    %4 = vector.load %arg2[%c0_3, %c0_4] : memref<32x1xf32, #tpu.memory_space<vmem>>, vector<32x1xf32>
    %c0_5 = arith.constant 0 : index
    %c0_6 = arith.constant 0 : index
    %5 = vector.load %arg4[%c0_5, %c0_6] : memref<1x128xf32, #tpu.memory_space<vmem>>, vector<1x128xf32>
    %6 = vector.broadcast %4 : vector<32x1xf32> to vector<32x128xf32>
    %7 = vector.broadcast %5 : vector<1x128xf32> to vector<32x128xf32>
    %8 = arith.mulf %6, %7 : vector<32x128xf32>
    %9 = arith.addf %3, %8 : vector<32x128xf32>
    %c0_7 = arith.constant 0 : index
    %c0_8 = arith.constant 0 : index
    %10 = vector.load %arg5[%c0_7, %c0_8] : memref<1x128xf32, #tpu.memory_space<vmem>>, vector<1x128xf32>
    %11 = vector.broadcast %10 : vector<1x128xf32> to vector<32x128xf32>
    %12 = arith.addf %9, %11 : vector<32x128xf32>
    %13 = arith.truncf %12 : vector<32x128xf32> to vector<32x128xbf16>
    %14 = math.tanh %13 : vector<32x128xbf16>
    %c0_9 = arith.constant 0 : index
    %c0_10 = arith.constant 0 : index
    %15 = vector.load %arg6[%c0_9, %c0_10] : memref<128x128xbf16, #tpu.memory_space<vmem>>, vector<128x128xbf16>
    %cst_11 = arith.constant dense<0.000000e+00> : vector<32x128xf32>
    %16 = tpu.matmul %14, %15, %cst_11 {dimension_numbers = #tpu.dot_dimension_numbers<[1], [0], [0], [1], [0, 0, 1, 1], [], []>} : vector<32x128xbf16>, vector<128x128xbf16>, vector<32x128xf32> -> vector<32x128xf32>
    %c0_12 = arith.constant 0 : index
    %c0_13 = arith.constant 0 : index
    %17 = vector.load %arg7[%c0_12, %c0_13] : memref<1x128xf32, #tpu.memory_space<vmem>>, vector<1x128xf32>
    %18 = vector.broadcast %17 : vector<1x128xf32> to vector<32x128xf32>
    %19 = arith.addf %16, %18 : vector<32x128xf32>
    %20 = math.tanh %19 : vector<32x128xf32>
    %c0_14 = arith.constant 0 : index
    %c0_15 = arith.constant 0 : index
    %21 = vector.load %arg8[%c0_14, %c0_15] : memref<1x128xf32, #tpu.memory_space<vmem>>, vector<1x128xf32>
    %22 = tpu.transpose %20, [1, 0] : vector<32x128xf32> -> vector<128x32xf32>
    %cst_16 = arith.constant dense<0.000000e+00> : vector<1x32xf32>
    %23 = tpu.matmul %21, %22, %cst_16 {dimension_numbers = #tpu.dot_dimension_numbers<[1], [0], [0], [1], [0, 0, 1, 1], [], []>} : vector<1x128xf32>, vector<128x32xf32>, vector<1x32xf32> -> vector<1x32xf32>
    %c0_17 = arith.constant 0 : index
    %c0_18 = arith.constant 0 : index
    %24 = memref.load %arg9[%c0_17, %c0_18] : memref<1x1xf32, #tpu.memory_space<smem>>
    %25 = vector.broadcast %24 : f32 to vector<1x32xf32>
    %26 = arith.addf %23, %25 : vector<1x32xf32>
    %27 = vector.shape_cast %26 : vector<1x32xf32> to vector<1x1x32xf32>
    %c0_19 = arith.constant 0 : index
    %c0_20 = arith.constant 0 : index
    %c0_21 = arith.constant 0 : index
    %28 = vector.load %arg10[%c0_19, %c0_20, %c0_21] : memref<1x1x32xf32, #tpu.memory_space<vmem>>, vector<1x1x32xf32>
    tpu.vector_store %arg10[%c0_19, %c0_20, %c0_21], %27 {strides = array<i32>} : memref<1x1x32xf32, #tpu.memory_space<vmem>>, vector<1x1x32xf32>,
    return
  }
  func.func @transform_0(%arg0: i32) -> (i32, i32) {
    %c0_i32 = arith.constant 0 : i32
    %c0_i32_0 = arith.constant 0 : i32
    return %arg0, %c0_i32 : i32, i32
  }
  func.func @transform_1(%arg0: i32) -> (i32, i32) {
    %c0_i32 = arith.constant 0 : i32
    %c0_i32_0 = arith.constant 0 : i32
    return %arg0, %c0_i32 : i32, i32
  }
  func.func @transform_2(%arg0: i32) -> (i32, i32) {
    %c0_i32 = arith.constant 0 : i32
    %c0_i32_0 = arith.constant 0 : i32
    %c0_i32_1 = arith.constant 0 : i32
    return %c0_i32, %c0_i32_0 : i32, i32
  }
  func.func @transform_3(%arg0: i32) -> (i32, i32) {
    %c0_i32 = arith.constant 0 : i32
    %c0_i32_0 = arith.constant 0 : i32
    %c0_i32_1 = arith.constant 0 : i32
    return %c0_i32, %c0_i32_0 : i32, i32
  }
  func.func @transform_4(%arg0: i32) -> (i32, i32) {
    %c0_i32 = arith.constant 0 : i32
    %c0_i32_0 = arith.constant 0 : i32
    %c0_i32_1 = arith.constant 0 : i32
    return %c0_i32, %c0_i32_0 : i32, i32
  }
  func.func @transform_5(%arg0: i32) -> (i32, i32) {
    %c0_i32 = arith.constant 0 : i32
    %c0_i32_0 = arith.constant 0 : i32
    %c0_i32_1 = arith.constant 0 : i32
    return %c0_i32, %c0_i32_0 : i32, i32
  }
  func.func @transform_6(%arg0: i32) -> (i32, i32) {
    %c0_i32 = arith.constant 0 : i32
    %c0_i32_0 = arith.constant 0 : i32
    %c0_i32_1 = arith.constant 0 : i32
    return %c0_i32, %c0_i32_0 : i32, i32
  }
  func.func @transform_7(%arg0: i32) -> (i32, i32) {
    %c0_i32 = arith.constant 0 : i32
    %c0_i32_0 = arith.constant 0 : i32
    %c0_i32_1 = arith.constant 0 : i32
    return %c0_i32, %c0_i32_0 : i32, i32
  }
  func.func @transform_8(%arg0: i32) -> (i32, i32) {
    %c0_i32 = arith.constant 0 : i32
    %c0_i32_0 = arith.constant 0 : i32
    %c0_i32_1 = arith.constant 0 : i32
    return %c0_i32, %c0_i32_0 : i32, i32
  }
  func.func @transform_9(%arg0: i32) -> (i32, i32, i32) {
    %c0_i32 = arith.constant 0 : i32
    %c0_i32_0 = arith.constant 0 : i32
    %c0_i32_1 = arith.constant 0 : i32
    return %arg0, %c0_i32, %c0_i32_0 : i32, i32, i32
  }
}

</mosaic_0001>

<llo_original>
// kernel: critic_forward.1
$region0: #{critic_forward.1}
  #allocation0 [shape = 'u32[]', space=smem, size = 0x4, offset = 0x4, fixed_abs, tag = 'smem constant byte address 0x4 - core index']
  #allocation1 [shape = 'u32[72,128]{1,0:T(1,128)}', space=vmem, size = 0x9000, scoped, tag = 'internal scratch']
  #allocation2 [shape = 'f32[1,1]{1,0:T(1,128)S(6)}', space=smem, size = 0x200, scoped, tag = 'scoped memory for critic_forward.1']
  %s0 = inlined_call_operand.vmem [shape: f32[64,24], index: 0, kind: input, shape index: {}]
  %s1 = inlined_call_operand.vmem [shape: f32[64,1], index: 1, kind: input, shape index: {}]
  %s2 = inlined_call_operand.vmem [shape: bf16[24,128], index: 2, kind: input, shape index: {}]
  %s3 = inlined_call_operand.vmem [shape: f32[1,128], index: 3, kind: input, shape index: {}]
  %s4 = inlined_call_operand.vmem [shape: f32[1,128], index: 4, kind: input, shape index: {}]
  %s5 = inlined_call_operand.vmem [shape: bf16[128,128], index: 5, kind: input, shape index: {}]
  %s6 = inlined_call_operand.vmem [shape: f32[1,128], index: 6, kind: input, shape index: {}]
  %s7 = inlined_call_operand.vmem [shape: f32[1,128], index: 7, kind: input, shape index: {}]
  %s8 = inlined_call_operand.<no memory space> [shape: f32[1,1], index: 8, kind: input, shape index: {}]
  %s9 = inlined_call_operand.vmem [shape: f32[2,1,32], index: 9, kind: output, shape index: {}]
  %s10 = sld [smem:[#allocation0]]
  $region69: #{critic_forward.1} parent=0
    _
  %s12 = ssub.s32 1, %s10
  %s13 = scalar_select 0, %s12, %s10
  %14 = sst [smem:[#allocation2]] %s8
  loop: start=0, step=1, limit=4
  $region2: #{critic_forward.1} parent=0 // loop_pre_header
    _
  $region3: #{critic_forward.1} parent=0 // loop_header
    %s16 = sphi 0, %s20
    %p17 = scmp.ge.s32.totalorder %s16, 4
    %s26 = sphi 0, %s28
    %s29 = sphi 0, %s26
    %s30 = sphi 0, %s29
    %s46 = sphi 0, %s30
    %s52 = sphi 0, %s54
    %s55 = sphi 0, %s52
    %s56 = sphi 0, %s55
    %s72 = sphi 0, %s56
    %s76 = sphi 0, %s76
    %s78 = sphi 0, %s76
    %s79 = sphi 0, %s78
    %s93 = sphi 0, %s79
    %s97 = sphi 0, %s97
    %s99 = sphi 0, %s97
    %s100 = sphi 0, %s99
    %s114 = sphi 0, %s100
    %s118 = sphi 0, %s118
    %s120 = sphi 0, %s118
    %s121 = sphi 0, %s120
    %s135 = sphi 0, %s121
    %s139 = sphi 0, %s139
    %s141 = sphi 0, %s139
    %s142 = sphi 0, %s141
    %s156 = sphi 0, %s142
    %s160 = sphi 0, %s160
    %s162 = sphi 0, %s160
    %s163 = sphi 0, %s162
    %s177 = sphi 0, %s163
    %s181 = sphi 0, %s181
    %s183 = sphi 0, %s181
    %s184 = sphi 0, %s183
    %s198 = sphi 0, %s184
    %s202 = sphi 0, %s202
    %s204 = sphi 0, %s202
    %s205 = sphi 0, %s204
    %s219 = sphi 0, %s205
    %s225 = sphi 0, %s227
    %s228 = sphi 0, %s225
    %s229 = sphi 0, %s228
    %s245 = sphi 0, %s229
  $region4: #{critic_forward.1} parent=0 // loop_header_branch
    %19 = sbr.rel (%p17) target = $region8
  $region5: #{critic_forward.1} parent=0 // loop_body
    %s21 = ssub.s32 %s16, 1
    %s22 = ssub.s32 %s16, 2
    %s23 = sadd.s32 %s16, 1
    %s24 = ssub.s32 %s16, %s23
    %p25 = scmp.eq.s32.totalorder %s24, 0
    %s27 = sadd.s32 %s26, 1
    %s28 = scalar_select %p25, %s26, %s27
    %p31 = pneg %p25
    %p32 = scmp.eq.s32.totalorder %s16, 1
    %p33 = por %p31, %p32
    %p34 = scmp.ne.s32.totalorder %s26, %s29
    %p35 = scmp.eq.s32.totalorder %s16, 0
    %p36 = por %p34, %p35
    %p37 = scmp.ne.s32.totalorder %s26, %s29
    %p38 = scmp.eq.s32.totalorder %s21, 1
    %p39 = por %p37, %p38
    %p40 = scmp.ne.s32.totalorder %s29, %s30
    %p41 = scmp.eq.s32.totalorder %s21, 0
    %p42 = por %p40, %p41
    %p43 = scmp.ne.s32.totalorder %s29, %s30
    %p44 = scmp.eq.s32.totalorder %s22, 1
    %p45 = por %p43, %p44
    %p47 = scmp.ne.s32.totalorder %s30, %s46
    %p48 = scmp.eq.s32.totalorder %s22, 0
    %p49 = por %p47, %p48
    %s50 = ssub.s32 %s16, %s23
    %p51 = scmp.eq.s32.totalorder %s50, 0
    %s53 = sadd.s32 %s52, 1
    %s54 = scalar_select %p51, %s52, %s53
    %p57 = pneg %p51
    %p58 = scmp.eq.s32.totalorder %s16, 1
    %p59 = por %p57, %p58
    %p60 = scmp.ne.s32.totalorder %s52, %s55
    %p61 = scmp.eq.s32.totalorder %s16, 0
    %p62 = por %p60, %p61
    %p63 = scmp.ne.s32.totalorder %s52, %s55
    %p64 = scmp.eq.s32.totalorder %s21, 1
    %p65 = por %p63, %p64
    %p66 = scmp.ne.s32.totalorder %s55, %s56
    %p67 = scmp.eq.s32.totalorder %s21, 0
    %p68 = por %p66, %p67
    %p69 = scmp.ne.s32.totalorder %s55, %s56
    %p70 = scmp.eq.s32.totalorder %s22, 1
    %p71 = por %p69, %p70
    %p73 = scmp.ne.s32.totalorder %s56, %s72
    %p74 = scmp.eq.s32.totalorder %s22, 0
    %p75 = por %p73, %p74
    %s77 = sadd.s32 %s76, 1
    %p80 = scmp.eq.s32.totalorder %s16, 1
    %p81 = scmp.ne.s32.totalorder %s76, %s78
    %p82 = scmp.eq.s32.totalorder %s16, 0
    %p83 = por %p81, %p82
    %p84 = scmp.ne.s32.totalorder %s76, %s78
    %p85 = scmp.eq.s32.totalorder %s21, 1
    %p86 = por %p84, %p85
    %p87 = scmp.ne.s32.totalorder %s78, %s79
    %p88 = scmp.eq.s32.totalorder %s21, 0
    %p89 = por %p87, %p88
    %p90 = scmp.ne.s32.totalorder %s78, %s79
    %p91 = scmp.eq.s32.totalorder %s22, 1
    %p92 = por %p90, %p91
    %p94 = scmp.ne.s32.totalorder %s79, %s93
    %p95 = scmp.eq.s32.totalorder %s22, 0
    %p96 = por %p94, %p95
    %s98 = sadd.s32 %s97, 1
    %p101 = scmp.eq.s32.totalorder %s16, 1
    %p102 = scmp.ne.s32.totalorder %s97, %s99
    %p103 = scmp.eq.s32.totalorder %s16, 0
    %p104 = por %p102, %p103
    %p105 = scmp.ne.s32.totalorder %s97, %s99
    %p106 = scmp.eq.s32.totalorder %s21, 1
    %p107 = por %p105, %p106
    %p108 = scmp.ne.s32.totalorder %s99, %s100
    %p109 = scmp.eq.s32.totalorder %s21, 0
    %p110 = por %p108, %p109
    %p111 = scmp.ne.s32.totalorder %s99, %s100
    %p112 = scmp.eq.s32.totalorder %s22, 1
    %p113 = por %p111, %p112
    %p115 = scmp.ne.s32.totalorder %s100, %s114
    %p116 = scmp.eq.s32.totalorder %s22, 0
    %p117 = por %p115, %p116
    %s119 = sadd.s32 %s118, 1
    %p122 = scmp.eq.s32.totalorder %s16, 1
    %p123 = scmp.ne.s32.totalorder %s118, %s120
    %p124 = scmp.eq.s32.totalorder %s16, 0
    %p125 = por %p123, %p124
    %p126 = scmp.ne.s32.totalorder %s118, %s120
    %p127 = scmp.eq.s32.totalorder %s21, 1
    %p128 = por %p126, %p127
    %p129 = scmp.ne.s32.totalorder %s120, %s121
    %p130 = scmp.eq.s32.totalorder %s21, 0
    %p131 = por %p129, %p130
    %p132 = scmp.ne.s32.totalorder %s120, %s121
    %p133 = scmp.eq.s32.totalorder %s22, 1
    %p134 = por %p132, %p133
    %p136 = scmp.ne.s32.totalorder %s121, %s135
    %p137 = scmp.eq.s32.totalorder %s22, 0
    %p138 = por %p136, %p137
    %s140 = sadd.s32 %s139, 1
    %p143 = scmp.eq.s32.totalorder %s16, 1
    %p144 = scmp.ne.s32.totalorder %s139, %s141
    %p145 = scmp.eq.s32.totalorder %s16, 0
    %p146 = por %p144, %p145
    %p147 = scmp.ne.s32.totalorder %s139, %s141
    %p148 = scmp.eq.s32.totalorder %s21, 1
    %p149 = por %p147, %p148
    %p150 = scmp.ne.s32.totalorder %s141, %s142
    %p151 = scmp.eq.s32.totalorder %s21, 0
    %p152 = por %p150, %p151
    %p153 = scmp.ne.s32.totalorder %s141, %s142
    %p154 = scmp.eq.s32.totalorder %s22, 1
    %p155 = por %p153, %p154
    %p157 = scmp.ne.s32.totalorder %s142, %s156
    %p158 = scmp.eq.s32.totalorder %s22, 0
    %p159 = por %p157, %p158
    %s161 = sadd.s32 %s160, 1
    %p164 = scmp.eq.s32.totalorder %s16, 1
    %p165 = scmp.ne.s32.totalorder %s160, %s162
    %p166 = scmp.eq.s32.totalorder %s16, 0
    %p167 = por %p165, %p166
    %p168 = scmp.ne.s32.totalorder %s160, %s162
    %p169 = scmp.eq.s32.totalorder %s21, 1
    %p170 = por %p168, %p169
    %p171 = scmp.ne.s32.totalorder %s162, %s163
    %p172 = scmp.eq.s32.totalorder %s21, 0
    %p173 = por %p171, %p172
    %p174 = scmp.ne.s32.totalorder %s162, %s163
    %p175 = scmp.eq.s32.totalorder %s22, 1
    %p176 = por %p174, %p175
    %p178 = scmp.ne.s32.totalorder %s163, %s177
    %p179 = scmp.eq.s32.totalorder %s22, 0
    %p180 = por %p178, %p179
    %s182 = sadd.s32 %s181, 1
    %p185 = scmp.eq.s32.totalorder %s16, 1
    %p186 = scmp.ne.s32.totalorder %s181, %s183
    %p187 = scmp.eq.s32.totalorder %s16, 0
    %p188 = por %p186, %p187
    %p189 = scmp.ne.s32.totalorder %s181, %s183
    %p190 = scmp.eq.s32.totalorder %s21, 1
    %p191 = por %p189, %p190
    %p192 = scmp.ne.s32.totalorder %s183, %s184
    %p193 = scmp.eq.s32.totalorder %s21, 0
    %p194 = por %p192, %p193
    %p195 = scmp.ne.s32.totalorder %s183, %s184
    %p196 = scmp.eq.s32.totalorder %s22, 1
    %p197 = por %p195, %p196
    %p199 = scmp.ne.s32.totalorder %s184, %s198
    %p200 = scmp.eq.s32.totalorder %s22, 0
    %p201 = por %p199, %p200
    %s203 = sadd.s32 %s202, 1
    %p206 = scmp.eq.s32.totalorder %s16, 1
    %p207 = scmp.ne.s32.totalorder %s202, %s204
    %p208 = scmp.eq.s32.totalorder %s16, 0
    %p209 = por %p207, %p208
    %p210 = scmp.ne.s32.totalorder %s202, %s204
    %p211 = scmp.eq.s32.totalorder %s21, 1
    %p212 = por %p210, %p211
    %p213 = scmp.ne.s32.totalorder %s204, %s205
    %p214 = scmp.eq.s32.totalorder %s21, 0
    %p215 = por %p213, %p214
    %p216 = scmp.ne.s32.totalorder %s204, %s205
    %p217 = scmp.eq.s32.totalorder %s22, 1
    %p218 = por %p216, %p217
    %p220 = scmp.ne.s32.totalorder %s205, %s219
    %p221 = scmp.eq.s32.totalorder %s22, 0
    %p222 = por %p220, %p221
    %s223 = ssub.s32 %s16, %s23
    %p224 = scmp.eq.s32.totalorder %s223, 0
    %s226 = sadd.s32 %s225, 1
    %s227 = scalar_select %p224, %s225, %s226
    %p230 = pneg %p224
    %p231 = scmp.eq.s32.totalorder %s16, 1
    %p232 = por %p230, %p231
    %p233 = scmp.ne.s32.totalorder %s225, %s228
    %p234 = scmp.eq.s32.totalorder %s16, 0
    %p235 = por %p233, %p234
    %p236 = scmp.ne.s32.totalorder %s225, %s228
    %p237 = scmp.eq.s32.totalorder %s21, 1
    %p238 = por %p236, %p237
    %p239 = scmp.ne.s32.totalorder %s228, %s229
    %p240 = scmp.eq.s32.totalorder %s21, 0
    %p241 = por %p239, %p240
    %p242 = scmp.ne.s32.totalorder %s228, %s229
    %p243 = scmp.eq.s32.totalorder %s22, 1
    %p244 = por %p242, %p243
    %p246 = scmp.ne.s32.totalorder %s229, %s245
    %p247 = scmp.eq.s32.totalorder %s22, 0
    %p248 = por %p246, %p247
    %p249 = scmp.le.s32.totalorder 1, %s16
    %p250 = scmp.lt.s32.totalorder %s16, 3
    %p251 = pnand %p249, %p250
    %p252 = pneg %p251
    // Predicated region
    $region9: #{critic_forward.1} parent=5 // pred_check
      _
    $region10: #{critic_forward.1} parent=5 // pred_check_branch
      %254 = sbr.rel (%p251) target = $region12
    $region11: #{critic_forward.1} parent=5 // pred_region
      %s255 = ssub.s32 %s16, 1
      // Predicated region
      $region13: #{critic_forward.1} parent=11 // pred_check
        %p256 = pneg %p89
      $region14: #{critic_forward.1} parent=11 // pred_check_branch
        %258 = sbr.rel (%p256) target = $region16
      $region15: #{critic_forward.1} parent=11 // pred_region
        _
      $region16: #{critic_forward.1} parent=11 // pred_fallthru
        _
      // Predicated region
      $region17: #{critic_forward.1} parent=11 // pred_check
        %p259 = pneg %p110
      $region18: #{critic_forward.1} parent=11 // pred_check_branch
        %261 = sbr.rel (%p259) target = $region20
      $region19: #{critic_forward.1} parent=11 // pred_region
        _
      $region20: #{critic_forward.1} parent=11 // pred_fallthru
        _
      // Predicated region
      $region21: #{critic_forward.1} parent=11 // pred_check
        %p262 = pneg %p131
      $region22: #{critic_forward.1} parent=11 // pred_check_branch
        %264 = sbr.rel (%p262) target = $region24
      $region23: #{critic_forward.1} parent=11 // pred_region
        _
      $region24: #{critic_forward.1} parent=11 // pred_fallthru
        _
      // Predicated region
      $region25: #{critic_forward.1} parent=11 // pred_check
        %p265 = pneg %p152
      $region26: #{critic_forward.1} parent=11 // pred_check_branch
        %267 = sbr.rel (%p265) target = $region28
      $region27: #{critic_forward.1} parent=11 // pred_region
        _
      $region28: #{critic_forward.1} parent=11 // pred_fallthru
        _
      // Predicated region
      $region29: #{critic_forward.1} parent=11 // pred_check
        %p268 = pneg %p173
      $region30: #{critic_forward.1} parent=11 // pred_check_branch
        %270 = sbr.rel (%p268) target = $region32
      $region31: #{critic_forward.1} parent=11 // pred_region
        _
      $region32: #{critic_forward.1} parent=11 // pred_fallthru
        _
      // Predicated region
      $region33: #{critic_forward.1} parent=11 // pred_check
        %p271 = pneg %p194
      $region34: #{critic_forward.1} parent=11 // pred_check_branch
        %273 = sbr.rel (%p271) target = $region36
      $region35: #{critic_forward.1} parent=11 // pred_region
        _
      $region36: #{critic_forward.1} parent=11 // pred_fallthru
        _
      // Predicated region
      $region37: #{critic_forward.1} parent=11 // pred_check
        %p274 = pneg %p215
      $region38: #{critic_forward.1} parent=11 // pred_check_branch
        %276 = sbr.rel (%p274) target = $region40
      $region39: #{critic_forward.1} parent=11 // pred_region
        _
      $region40: #{critic_forward.1} parent=11 // pred_fallthru
        _
    $region12: #{critic_forward.1} parent=5 // pred_fallthru
      _
    %p277 = scmp.lt.s32.totalorder %s16, 2
    // Predicated region
    $region41: #{critic_forward.1} parent=5 // pred_check
      %p278 = pneg %p277
    $region42: #{critic_forward.1} parent=5 // pred_check_branch
      %280 = sbr.rel (%p278) target = $region44
    $region43: #{critic_forward.1} parent=5 // pred_region
      // Predicated region
      $region45: #{critic_forward.1} parent=43 // pred_check
        %p281 = pneg %p36
      $region46: #{critic_forward.1} parent=43 // pred_check_branch
        %283 = sbr.rel (%p281) target = $region48
      $region47: #{critic_forward.1} parent=43 // pred_region
        %s284 = smul.u32 4, %s16
        %p285 = scmp.lt.s32.totalorder %s284, 7
        %s286 = scalar_select %p285, %s284, 7
        %s287 = smul.addr %s286, 8
        %s288 = scalar_lea.vmem %s0, %s287
        %s289 = smul.u32 4, %s16
      $region48: #{critic_forward.1} parent=43 // pred_fallthru
        _
      // Predicated region
      $region49: #{critic_forward.1} parent=43 // pred_check
        %p290 = pneg %p62
      $region50: #{critic_forward.1} parent=43 // pred_check_branch
        %292 = sbr.rel (%p290) target = $region52
      $region51: #{critic_forward.1} parent=43 // pred_region
        %s293 = smul.u32 4, %s16
        %p294 = scmp.lt.s32.totalorder %s293, 7
        %s295 = scalar_select %p294, %s293, 7
        %s296 = smul.addr %s295, 8
        %s297 = scalar_lea.vmem %s1, %s296
        %s298 = smul.u32 4, %s16
      $region52: #{critic_forward.1} parent=43 // pred_fallthru
        _
    $region44: #{critic_forward.1} parent=5 // pred_fallthru
      _
    %p299 = scmp.le.s32.totalorder 1, %s16
    %p300 = scmp.lt.s32.totalorder %s16, 3
    %p301 = pnand %p299, %p300
    %p302 = pneg %p301
    // Predicated region
    $region53: #{critic_forward.1} parent=5 // pred_check
      _
    $region54: #{critic_forward.1} parent=5 // pred_check_branch
      %304 = sbr.rel (%p301) target = $region56
    $region55: #{critic_forward.1} parent=5 // pred_region
      %s305 = ssub.s32 %s16, 1
      %s306 = smul.u32 4, %s21
      %p307 = scmp.lt.s32.totalorder %s306, 7
      %s308 = scalar_select %p307, %s306, 7
      %s309 = smul.addr %s308, 8
      %s310 = scalar_lea.vmem %s0, %s309
      %p311 = pneg %p42
      %p312 = pneg %p39
      %s313 = smul.u32 4, %s21
      %p314 = scmp.lt.s32.totalorder %s313, 7
      %s315 = scalar_select %p314, %s313, 7
      %s316 = smul.addr %s315, 8
      %s317 = scalar_lea.vmem %s1, %s316
      %p318 = pneg %p68
      %p319 = pneg %p65
      %p320 = pneg %p89
      %p321 = pneg %p86
      %p322 = pneg %p110
      %p323 = pneg %p107
      %p324 = pneg %p131
      %p325 = pneg %p128
      %p326 = pneg %p152
      %p327 = pneg %p149
      %p328 = pneg %p173
      %p329 = pneg %p170
      %p330 = pneg %p194
      %p331 = pneg %p191
      %p332 = pneg %p215
      %p333 = pneg %p212
      %p334 = pneg %p241
      %p335 = pneg %p238
      %p336 = scmp.lt.s32.totalorder %s21, 1
      %s337 = scalar_select %p336, %s21, 1
      %s338 = scalar_lea.vmem %s9, %s337
      %s339 = smul.u32 4, %s21
      %p340 = scmp.lt.s32.totalorder %s339, 7
      %s341 = scalar_select %p340, %s339, 7
      %s342 = smul.addr %s341, 8
      %s343 = scalar_lea.vmem %s0, %s342
      %s344 = smul.u32 4, %s21
      %s345 = smul.u32 4, %s21
      %p346 = scmp.lt.s32.totalorder %s345, 7
      %s347 = scalar_select %p346, %s345, 7
      %s348 = smul.addr %s347, 8
      %s349 = scalar_lea.vmem %s1, %s348
      %s350 = smul.u32 4, %s21
      %p351 = scmp.lt.s32.totalorder %s21, 1
      %s352 = scalar_select %p351, %s21, 1
      %s353 = scalar_lea.vmem %s9, %s352
      %v355 = vld [vmem:[%s343] sm:$0xff]
      %v356 = vld [vmem:[%s343 + $0x8] sm:$0xff]
      %v357 = vld [vmem:[%s343 + $0x10] sm:$0xff]
      %v358 = vld [vmem:[%s343 + $0x18] sm:$0xff]
      %v359 = vpack.c.bf16 %v356, %v355
      %v360 = vpack.c.bf16 %v358, %v357
      %v361 = vld [vmem:[%s2] sm:$0xf]
      %v362 = vld [vmem:[%s2 + $0x4] sm:$0xf]
      %v363 = vld [vmem:[%s2 + $0x8] sm:$0xf]
      %v364 = vld [vmem:[%s349] sm:$0xff]
      %v365 = vld [vmem:[%s349 + $0x8] sm:$0xff]
      %v366 = vld [vmem:[%s349 + $0x10] sm:$0xff]
      %v367 = vld [vmem:[%s349 + $0x18] sm:$0xff]
      %v368 = vld [vmem:[%s3] sm:$0x1]
      %370 = vset.pattern.permute.xlu0 0
      %371 = vperm.xlu0 %370, %v364
      %v372 = vpop.permute.xlu0 %371
      %375 = vset.pattern.permute.xlu0 0
      %376 = vperm.xlu0 %375, %v365
      %v377 = vpop.permute.xlu0 %376
      %380 = vset.pattern.permute.xlu0 0
      %381 = vperm.xlu0 %380, %v366
      %v382 = vpop.permute.xlu0 %381
      %385 = vset.pattern.permute.xlu0 0
      %386 = vperm.xlu0 %385, %v367
      %v387 = vpop.permute.xlu0 %386
      %v390 = vperm.slane %v368, 0
      %v392 = vmul.f32 %v372, %v390
      %v393 = vmul.f32 %v377, %v390
      %v394 = vmul.f32 %v382, %v390
      %v395 = vmul.f32 %v387, %v390
      %v399 = vunpack.c.l.b16 %v361
      %v400 = vunpack.c.l.b16 %v362
      %v401 = vunpack.c.l.b16 %v363
      %v402 = vpack.c.b16 %v400, %v399
      %v403 = vpack.c.b16 %v401, %v401
      %vm405 = vcmask 195584
      %v407 = vsel %vm405, %v359, 0
      %v410 = vsel %vm405, %v360, 0
      %vm412 = vcmask 1043456
      %v414 = vsel %vm412, %v403, 0
      %416 = vmatpush.bf16.msra.mxu0 0
      %417 = vmatpush.bf16.msra.mxu0 0
      %418 = vmatpush.bf16.msra.mxu0 0
      %419 = vmatpush.bf16.msra.mxu0 0
      %420 = vmatpush.bf16.msra.mxu0 0
      %421 = vmatpush.bf16.msra.mxu0 0
      %422 = vmatpush.bf16.msra.mxu0 %v414
      %423 = vmatpush.bf16.msra.mxu0 %v402
      %424 = vmatmul.bf16.gmra.mxu0 %v407
      %v425 = vpop.f32.mrf.mxu0
      %v426 = vadd.f32 %v392, %v425
      %v427 = vpop.f32.mrf.mxu0
      %v428 = vadd.f32 %v393, %v427
      %429 = vmatmul.bf16.gmra.mxu0 %v410
      %v430 = vpop.f32.mrf.mxu0
      %v431 = vadd.f32 %v394, %v430
      %v432 = vpop.f32.mrf.mxu0
      %v433 = vadd.f32 %v395, %v432
      %434 = vdwg.mxu0
      %v435 = vld [vmem:[%s4] sm:$0x1]
      %v437 = vperm.slane %v435, 0
      %v439 = vadd.f32 %v426, %v437
      %v440 = vadd.f32 %v428, %v437
      %v441 = vadd.f32 %v431, %v437
      %v442 = vadd.f32 %v433, %v437
      %v443 = vpack.c.bf16 %v440, %v439
      %v444 = vpack.c.bf16 %v442, %v441
      %v445 = vunpack.c.l.bf16 %v443
      %v446 = vunpack.c.h.bf16 %v443
      %v447 = vunpack.c.l.bf16 %v444
      %v448 = vunpack.c.h.bf16 %v444
      %v449 = vtanh.pop %v445
      %v450 = vtanh.pop %v446
      %v451 = vtanh.pop %v447
      %v452 = vtanh.pop %v448
      %v453 = vpack.c.bf16 %v450, %v449
      %v454 = vpack.c.bf16 %v452, %v451
      %v455 = vld [vmem:[%s5] sm:$0xf]
      %v456 = vld [vmem:[%s5 + $0x4] sm:$0xf]
      %v457 = vld [vmem:[%s5 + $0x8] sm:$0xf]
      %v458 = vld [vmem:[%s5 + $0xc] sm:$0xf]
      %v459 = vld [vmem:[%s5 + $0x10] sm:$0xf]
      %v460 = vld [vmem:[%s5 + $0x14] sm:$0xf]
      %v461 = vld [vmem:[%s5 + $0x18] sm:$0xf]
      %v462 = vld [vmem:[%s5 + $0x1c] sm:$0xf]
      %v463 = vld [vmem:[%s5 + $0x20] sm:$0xf]
      %v464 = vld [vmem:[%s5 + $0x24] sm:$0xf]
      %v465 = vld [vmem:[%s5 + $0x28] sm:$0xf]
      %v466 = vld [vmem:[%s5 + $0x2c] sm:$0xf]
      %v467 = vld [vmem:[%s5 + $0x30] sm:$0xf]
      %v468 = vld [vmem:[%s5 + $0x34] sm:$0xf]
      %v469 = vld [vmem:[%s5 + $0x38] sm:$0xf]
      %v470 = vld [vmem:[%s5 + $0x3c] sm:$0xf]
      %v471 = vld [vmem:[%s6] sm:$0x1]
      %v473 = vperm.slane %v471, 0
      %v491 = vunpack.c.l.b16 %v455
      %v492 = vunpack.c.l.b16 %v456
      %v493 = vunpack.c.l.b16 %v457
      %v494 = vunpack.c.l.b16 %v458
      %v495 = vunpack.c.l.b16 %v459
      %v496 = vunpack.c.l.b16 %v460
      %v497 = vunpack.c.l.b16 %v461
      %v498 = vunpack.c.l.b16 %v462
      %v499 = vunpack.c.l.b16 %v463
      %v500 = vunpack.c.l.b16 %v464
      %v501 = vunpack.c.l.b16 %v465
      %v502 = vunpack.c.l.b16 %v466
      %v503 = vunpack.c.l.b16 %v467
      %v504 = vunpack.c.l.b16 %v468
      %v505 = vunpack.c.l.b16 %v469
      %v506 = vunpack.c.l.b16 %v470
      %v507 = vpack.c.b16 %v492, %v491
      %v508 = vpack.c.b16 %v494, %v493
      %v509 = vpack.c.b16 %v496, %v495
      %v510 = vpack.c.b16 %v498, %v497
      %v511 = vpack.c.b16 %v500, %v499
      %v512 = vpack.c.b16 %v502, %v501
      %v513 = vpack.c.b16 %v504, %v503
      %v514 = vpack.c.b16 %v506, %v505
      %523 = vmatpush.bf16.msra.mxu0 %v514
      %524 = vmatpush.bf16.msra.mxu0 %v513
      %525 = vmatpush.bf16.msra.mxu0 %v512
      %526 = vmatpush.bf16.msra.mxu0 %v511
      %527 = vmatpush.bf16.msra.mxu0 %v510
      %528 = vmatpush.bf16.msra.mxu0 %v509
      %529 = vmatpush.bf16.msra.mxu0 %v508
      %530 = vmatpush.bf16.msra.mxu0 %v507
      %531 = vmatmul.bf16.gmra.mxu0 %v453
      %v532 = vpop.f32.mrf.mxu0
      %v533 = vadd.f32 %v473, %v532
      %v534 = vpop.f32.mrf.mxu0
      %v535 = vadd.f32 %v473, %v534
      %536 = vmatmul.bf16.gmra.mxu0 %v454
      %v537 = vpop.f32.mrf.mxu0
      %v538 = vadd.f32 %v473, %v537
      %v539 = vpop.f32.mrf.mxu0
      %v540 = vadd.f32 %v473, %v539
      %541 = vdwg.mxu0
      %v542 = vtanh.pop %v533
      %v543 = vtanh.pop %v535
      %v544 = vtanh.pop %v538
      %v545 = vtanh.pop %v540
      %v546 = vld [vmem:[%s7] sm:$0x1]
      %s547 = sld [smem:[#allocation2]]
      %v548 = vstv %s547
      %549 = vmatpush.xpose.msra.mxu0 0.0
      %550 = vmatpush.xpose.msra.mxu0 0.0
      %551 = vmatpush.xpose.msra.mxu0 0.0
      %552 = vmatpush.xpose.msra.mxu0 0.0
      %553 = vmatpush.xpose.msra.mxu0 0.0
      %554 = vmatpush.xpose.msra.mxu0 0.0
      %555 = vmatpush.xpose.msra.mxu0 0.0
      %556 = vmatpush.xpose.msra.mxu0 0.0
      %557 = vmatpush.xpose.msra.mxu0 0.0
      %558 = vmatpush.xpose.msra.mxu0 0.0
      %559 = vmatpush.xpose.msra.mxu0 0.0
      %560 = vmatpush.xpose.msra.mxu0 0.0
      %561 = vmatpush.xpose.msra.mxu0 %v545
      %562 = vmatpush.xpose.msra.mxu0 %v544
      %563 = vmatpush.xpose.msra.mxu0 %v543
      %564 = vmatpush.xpose.msra.mxu0 %v542
      %565 = vmatmul.f32.gmra.mxu0 %v546
      %v566 = vpop.f32.mrf.mxu0
      %v567 = vadd.f32 %v548, %v566
      %568 = vdwg.mxu0
      %vm569 = vcmask 253952
      %570 = vst.msk [vmem:[%s353] sm:$0x1] %vm569, %v567
      %p571 = scmp.lt.s32.totalorder %s21, 1
      %s572 = scalar_select %p571, %s21, 1
      %s573 = scalar_lea.vmem %s9, %s572
      // Predicated region
      $region57: #{critic_forward.1} parent=55 // pred_check
        %p574 = pneg %p238
      $region58: #{critic_forward.1} parent=55 // pred_check_branch
        %576 = sbr.rel (%p574) target = $region60
      $region59: #{critic_forward.1} parent=55 // pred_region
        _
      $region60: #{critic_forward.1} parent=55 // pred_fallthru
        _
    $region56: #{critic_forward.1} parent=5 // pred_fallthru
      _
    %p577 = scmp.le.s32.totalorder 2, %s16
    // Predicated region
    $region61: #{critic_forward.1} parent=5 // pred_check
      %p578 = pneg %p577
    $region62: #{critic_forward.1} parent=5 // pred_check_branch
      %580 = sbr.rel (%p578) target = $region64
    $region63: #{critic_forward.1} parent=5 // pred_region
      %s581 = ssub.s32 %s16, 2
      // Predicated region
      $region65: #{critic_forward.1} parent=63 // pred_check
        %p582 = pneg %p244
      $region66: #{critic_forward.1} parent=63 // pred_check_branch
        %584 = sbr.rel (%p582) target = $region68
      $region67: #{critic_forward.1} parent=63 // pred_region
        %p585 = scmp.lt.s32.totalorder %s22, 1
        %s586 = scalar_select %p585, %s22, 1
        %s587 = scalar_lea.vmem %s9, %s586
      $region68: #{critic_forward.1} parent=63 // pred_fallthru
        _
    $region64: #{critic_forward.1} parent=5 // pred_fallthru
      _
  $region6: #{critic_forward.1} parent=0 // loop_footer
    %s20 = sadd.s32 1, %s16
  $region7: #{critic_forward.1} parent=0 // loop_footer_branch
    %15 = sbr.rel target = $region3
  $region8: #{critic_forward.1} parent=0 // loop_exit
    _

</llo_original>
